<compile_context>
chip_gen: v7x
topology: tpu7x:2x2x1
jax: 0.10.0
libtpu: 0.0.40
codegen_flags: <defaults>
</compile_context>

<pallas_src>
import functools

import jax
import jax.numpy as jnp
from jax import lax
from jax.experimental import pallas as pl
from jax.experimental.pallas import tpu as pltpu


def _window_partition_kernel(x_ref, o_ref, *, P: int, nW: int, W: int, k: int,
                             unroll: bool):
    # x_ref: (1, C, k*P*W)      -- k window-rows of the NCHW image, W merged
    #                              into the lane dim (lane-dense load)
    # o_ref: (1, k*nW, P*P, C)  -- those k*nW windows, (tokens, channels)
    C = x_ref.shape[1]

    # Bulk NCHW -> channels-last relayout, once per block:
    #   (C, k*P*W) -T-> (k*P*W, C) -reshape-> (spatial_row, win_col, in_win_col, C)
    rows = x_ref[0].T.reshape(k * P, nW, P, C)

    if unroll:
        # Small blocks: fully unrolled, static offsets everywhere.
        for r in range(k):           # window-row within this block
            for pi in range(P):      # row within the window
                o_ref[0, pl.ds(r * nW, nW), pl.ds(pi * P, P), :] = rows[r * P + pi]
    else:
        # Large blocks: bound live ranges / code size with an scf.for over r.
        @pl.loop(0, k)
        def _(r):
            for pi in range(P):
                row = lax.dynamic_index_in_dim(rows, r * P + pi, axis=0,
                                               keepdims=False)   # (nW, P, C)
                o_ref[0, pl.ds(r * nW, nW), pl.ds(pi * P, P), :] = row


def _choose_k(nH: int, nW: int, P: int, W: int, C: int, B: int, itemsize: int,
              budget_bytes: int, min_grid_steps: int) -> int:
    """Pick k = window-rows per grid step.

    Constraints / preferences:
      * tiling-legal: minor block dim (k*P*W) % 128 == 0, or k == nH (full extent)
      * per-step working set within `budget_bytes` (conservative for v7x 64 MiB VMEM)
      * prefer enough grid steps (>= min_grid_steps) for pipelining / 2 TCs.
    """
    def legal(d):
        return d == nH or (d * P * W) % 128 == 0

    def block_bytes(d):
        in_b = C * d * P * W * itemsize                     # lane-dense input block
        c_pad = max(C, 128)                                 # channels-minor lane padding
        pp_pad = ((P * P + 7) // 8) * 8                     # token-dim sublane padding
        out_b = d * nW * pp_pad * c_pad * itemsize
        # double-buffered input + double-buffered output + transposed scratch copy
        return 2 * in_b + 2 * out_b + out_b

    divisors = [d for d in range(1, nH + 1) if nH % d == 0]
    legal_divs = [d for d in divisors if legal(d)] or [nH]
    fitting = ([d for d in legal_divs if block_bytes(d) <= budget_bytes]
               or [min(legal_divs)])

    max_steps = B * (nH // min(fitting))
    target = min(min_grid_steps, max_steps)
    return max(d for d in fitting if B * (nH // d) >= target)


def window_partition(x_nchw: jax.Array, p: int,
                     *, vmem_block_budget_bytes: int = 8 * 1024 * 1024,
                     vmem_limit_bytes: int = 32 * 1024 * 1024,
                     min_grid_steps: int = 8) -> jax.Array:
    """Pallas equivalent of MaxVit WindowPartition.forward (input NCHW)."""
    B, C, H, W = x_nchw.shape
    P = int(p)
    assert H % P == 0 and W % P == 0, "H and W must be divisible by p"
    nH, nW = H // P, W // P

    itemsize = jnp.dtype(x_nchw.dtype).itemsize
    k = _choose_k(nH, nW, P, W, C, B, itemsize,
                  vmem_block_budget_bytes, min_grid_steps)
    nblk = nH // k

    # Free, layout-preserving reshape: merged H*W minor dim gives lane-dense,
    # contiguous per-channel input DMAs (W alone can be << 128 in late stages).
    x_flat = x_nchw.reshape(B, C, H * W)

    out_shape = jax.ShapeDtypeStruct((B, nH * nW, P * P, C), x_nchw.dtype)

    # Input block: full C (second-minor = full extent), minor = k*P*W
    # (multiple of 128 or full H*W by construction of k).
    in_spec = pl.BlockSpec((1, C, k * P * W), lambda b, r: (b, 0, r))
    # Output block: all k*nW windows of this block; trailing dims are the full
    # (P*P, C) extents (tiling-safe writeback).
    out_spec = pl.BlockSpec((1, k * nW, P * P, C), lambda b, r: (b, r, 0, 0))

    kernel = functools.partial(_window_partition_kernel, P=P, nW=nW, W=W, k=k,
                               unroll=(k * P <= 64))

    return pl.pallas_call(
        kernel,
        out_shape=out_shape,
        grid_spec=pltpu.PrefetchScalarGridSpec(
            num_scalar_prefetch=0,
            grid=(B, nblk),
            in_specs=[in_spec],
            out_specs=out_spec,
        ),
        compiler_params=pltpu.CompilerParams(
            dimension_semantics=("parallel", "parallel"),
            vmem_limit_bytes=vmem_limit_bytes,
        ),
    )(x_flat)


def window_partition_ref(x_nchw: jax.Array, p: int) -> jax.Array:
    """Pure-JAX reference mirroring the PyTorch module exactly."""
    B, C, H, W = x_nchw.shape
    P = int(p)
    xr = x_nchw.reshape(B, C, H // P, P, W // P, P)
    xr = jnp.transpose(xr, (0, 2, 4, 3, 5, 1))
    return xr.reshape(B, (H // P) * (W // P), P * P, C)


if __name__ == "__main__":
    key = jax.random.PRNGKey(0)
    B, C, H, W = 2, 4, 16, 16
    p = 4

    x = jax.random.normal(key, (B, C, H, W), dtype=jnp.float32)

    out = window_partition(x, p)
    out = jax.block_until_ready(out)

    ref = window_partition_ref(x, p)

    assert out.shape == (B, (H // p) * (W // p), p * p, C), out.shape
    assert out.dtype == x.dtype
    assert jnp.allclose(out, ref), "Pallas output does not match reference"

    print("KERNEL_OK")
</pallas_src>

<mosaic_0001>
module attributes {stable_mosaic.version = 11 : i64} {
  func.func @_window_partition_kernel(%arg0: i32, %arg1: i32, %arg2: memref<1x4x128xf32, #tpu.memory_space<vmem>>, %arg3: memref<1x8x16x4xf32, #tpu.memory_space<vmem>>) attributes {dimension_semantics = [#tpu.dimension_semantics<parallel>, #tpu.dimension_semantics<parallel>], iteration_bounds = array<i64: 2, 2>, scalar_prefetch = 0 : i64, scratch_operands = 0 : i64, tpu.core_type = #tpu.core_type<tc>, window_params = [{transform_indices = @transform_0, window_bounds = array<i64: 1, 4, 128>}, {transform_indices = @transform_1, window_bounds = array<i64: 1, 8, 16, 4>}]} {
    %c0 = arith.constant 0 : index
    %c0_0 = arith.constant 0 : index
    %c0_1 = arith.constant 0 : index
    %0 = vector.load %arg2[%c0, %c0_0, %c0_1] : memref<1x4x128xf32, #tpu.memory_space<vmem>>, vector<1x4x128xf32>
    %1 = vector.shape_cast %0 : vector<1x4x128xf32> to vector<4x128xf32>
    %2 = tpu.transpose %1, [1, 0] : vector<4x128xf32> -> vector<128x4xf32>
    %3 = vector.shape_cast %2 : vector<128x4xf32> to vector<8x4x4x4xf32>
    %4 = vector.extract_strided_slice %3 {offsets = [0, 0, 0, 0], sizes = [1, 4, 4, 4], strides = [1, 1, 1, 1]} : vector<8x4x4x4xf32> to vector<1x4x4x4xf32>
    %5 = vector.shape_cast %4 : vector<1x4x4x4xf32> to vector<4x4x4xf32>
    %c0_2 = arith.constant 0 : index
    %c0_3 = arith.constant 0 : index
    %c0_4 = arith.constant 0 : index
    %c0_5 = arith.constant 0 : index
    %6 = vector.load %arg3[%c0_2, %c0_3, %c0_4, %c0_5] : memref<1x8x16x4xf32, #tpu.memory_space<vmem>>, vector<1x4x4x4xf32>
    %7 = vector.shape_cast %6 : vector<1x4x4x4xf32> to vector<4x4x4xf32>
    %8 = vector.shape_cast %5 : vector<4x4x4xf32> to vector<1x4x4x4xf32>
    tpu.vector_store %arg3[%c0_2, %c0_3, %c0_4, %c0_5], %8 {strides = array<i32>} : memref<1x8x16x4xf32, #tpu.memory_space<vmem>>, vector<1x4x4x4xf32>,
    %9 = vector.extract_strided_slice %3 {offsets = [1, 0, 0, 0], sizes = [1, 4, 4, 4], strides = [1, 1, 1, 1]} : vector<8x4x4x4xf32> to vector<1x4x4x4xf32>
    %10 = vector.shape_cast %9 : vector<1x4x4x4xf32> to vector<4x4x4xf32>
    %c0_6 = arith.constant 0 : index
    %c0_7 = arith.constant 0 : index
    %c4 = arith.constant 4 : index
    %c0_8 = arith.constant 0 : index
    %11 = vector.load %arg3[%c0_6, %c0_7, %c4, %c0_8] : memref<1x8x16x4xf32, #tpu.memory_space<vmem>>, vector<1x4x4x4xf32>
    %12 = vector.shape_cast %11 : vector<1x4x4x4xf32> to vector<4x4x4xf32>
    %13 = vector.shape_cast %10 : vector<4x4x4xf32> to vector<1x4x4x4xf32>
    tpu.vector_store %arg3[%c0_6, %c0_7, %c4, %c0_8], %13 {strides = array<i32>} : memref<1x8x16x4xf32, #tpu.memory_space<vmem>>, vector<1x4x4x4xf32>,
    %14 = vector.extract_strided_slice %3 {offsets = [2, 0, 0, 0], sizes = [1, 4, 4, 4], strides = [1, 1, 1, 1]} : vector<8x4x4x4xf32> to vector<1x4x4x4xf32>
    %15 = vector.shape_cast %14 : vector<1x4x4x4xf32> to vector<4x4x4xf32>
    %c0_9 = arith.constant 0 : index
    %c0_10 = arith.constant 0 : index
    %c8 = arith.constant 8 : index
    %c0_11 = arith.constant 0 : index
    %16 = vector.load %arg3[%c0_9, %c0_10, %c8, %c0_11] : memref<1x8x16x4xf32, #tpu.memory_space<vmem>>, vector<1x4x4x4xf32>
    %17 = vector.shape_cast %16 : vector<1x4x4x4xf32> to vector<4x4x4xf32>
    %18 = vector.shape_cast %15 : vector<4x4x4xf32> to vector<1x4x4x4xf32>
    tpu.vector_store %arg3[%c0_9, %c0_10, %c8, %c0_11], %18 {strides = array<i32>} : memref<1x8x16x4xf32, #tpu.memory_space<vmem>>, vector<1x4x4x4xf32>,
    %19 = vector.extract_strided_slice %3 {offsets = [3, 0, 0, 0], sizes = [1, 4, 4, 4], strides = [1, 1, 1, 1]} : vector<8x4x4x4xf32> to vector<1x4x4x4xf32>
    %20 = vector.shape_cast %19 : vector<1x4x4x4xf32> to vector<4x4x4xf32>
    %c0_12 = arith.constant 0 : index
    %c0_13 = arith.constant 0 : index
    %c12 = arith.constant 12 : index
    %c0_14 = arith.constant 0 : index
    %21 = vector.load %arg3[%c0_12, %c0_13, %c12, %c0_14] : memref<1x8x16x4xf32, #tpu.memory_space<vmem>>, vector<1x4x4x4xf32>
    %22 = vector.shape_cast %21 : vector<1x4x4x4xf32> to vector<4x4x4xf32>
    %23 = vector.shape_cast %20 : vector<4x4x4xf32> to vector<1x4x4x4xf32>
    tpu.vector_store %arg3[%c0_12, %c0_13, %c12, %c0_14], %23 {strides = array<i32>} : memref<1x8x16x4xf32, #tpu.memory_space<vmem>>, vector<1x4x4x4xf32>,
    %24 = vector.extract_strided_slice %3 {offsets = [4, 0, 0, 0], sizes = [1, 4, 4, 4], strides = [1, 1, 1, 1]} : vector<8x4x4x4xf32> to vector<1x4x4x4xf32>
    %25 = vector.shape_cast %24 : vector<1x4x4x4xf32> to vector<4x4x4xf32>
    %c0_15 = arith.constant 0 : index
    %c4_16 = arith.constant 4 : index
    %c0_17 = arith.constant 0 : index
    %c0_18 = arith.constant 0 : index
    %26 = vector.load %arg3[%c0_15, %c4_16, %c0_17, %c0_18] : memref<1x8x16x4xf32, #tpu.memory_space<vmem>>, vector<1x4x4x4xf32>
    %27 = vector.shape_cast %26 : vector<1x4x4x4xf32> to vector<4x4x4xf32>
    %28 = vector.shape_cast %25 : vector<4x4x4xf32> to vector<1x4x4x4xf32>
    tpu.vector_store %arg3[%c0_15, %c4_16, %c0_17, %c0_18], %28 {strides = array<i32>} : memref<1x8x16x4xf32, #tpu.memory_space<vmem>>, vector<1x4x4x4xf32>,
    %29 = vector.extract_strided_slice %3 {offsets = [5, 0, 0, 0], sizes = [1, 4, 4, 4], strides = [1, 1, 1, 1]} : vector<8x4x4x4xf32> to vector<1x4x4x4xf32>
    %30 = vector.shape_cast %29 : vector<1x4x4x4xf32> to vector<4x4x4xf32>
    %c0_19 = arith.constant 0 : index
    %c4_20 = arith.constant 4 : index
    %c4_21 = arith.constant 4 : index
    %c0_22 = arith.constant 0 : index
    %31 = vector.load %arg3[%c0_19, %c4_20, %c4_21, %c0_22] : memref<1x8x16x4xf32, #tpu.memory_space<vmem>>, vector<1x4x4x4xf32>
    %32 = vector.shape_cast %31 : vector<1x4x4x4xf32> to vector<4x4x4xf32>
    %33 = vector.shape_cast %30 : vector<4x4x4xf32> to vector<1x4x4x4xf32>
    tpu.vector_store %arg3[%c0_19, %c4_20, %c4_21, %c0_22], %33 {strides = array<i32>} : memref<1x8x16x4xf32, #tpu.memory_space<vmem>>, vector<1x4x4x4xf32>,
    %34 = vector.extract_strided_slice %3 {offsets = [6, 0, 0, 0], sizes = [1, 4, 4, 4], strides = [1, 1, 1, 1]} : vector<8x4x4x4xf32> to vector<1x4x4x4xf32>
    %35 = vector.shape_cast %34 : vector<1x4x4x4xf32> to vector<4x4x4xf32>
    %c0_23 = arith.constant 0 : index
    %c4_24 = arith.constant 4 : index
    %c8_25 = arith.constant 8 : index
    %c0_26 = arith.constant 0 : index
    %36 = vector.load %arg3[%c0_23, %c4_24, %c8_25, %c0_26] : memref<1x8x16x4xf32, #tpu.memory_space<vmem>>, vector<1x4x4x4xf32>
    %37 = vector.shape_cast %36 : vector<1x4x4x4xf32> to vector<4x4x4xf32>
    %38 = vector.shape_cast %35 : vector<4x4x4xf32> to vector<1x4x4x4xf32>
    tpu.vector_store %arg3[%c0_23, %c4_24, %c8_25, %c0_26], %38 {strides = array<i32>} : memref<1x8x16x4xf32, #tpu.memory_space<vmem>>, vector<1x4x4x4xf32>,
    %39 = vector.extract_strided_slice %3 {offsets = [7, 0, 0, 0], sizes = [1, 4, 4, 4], strides = [1, 1, 1, 1]} : vector<8x4x4x4xf32> to vector<1x4x4x4xf32>
    %40 = vector.shape_cast %39 : vector<1x4x4x4xf32> to vector<4x4x4xf32>
    %c0_27 = arith.constant 0 : index
    %c4_28 = arith.constant 4 : index
    %c12_29 = arith.constant 12 : index
    %c0_30 = arith.constant 0 : index
    %41 = vector.load %arg3[%c0_27, %c4_28, %c12_29, %c0_30] : memref<1x8x16x4xf32, #tpu.memory_space<vmem>>, vector<1x4x4x4xf32>
    %42 = vector.shape_cast %41 : vector<1x4x4x4xf32> to vector<4x4x4xf32>
    %43 = vector.shape_cast %40 : vector<4x4x4xf32> to vector<1x4x4x4xf32>
    tpu.vector_store %arg3[%c0_27, %c4_28, %c12_29, %c0_30], %43 {strides = array<i32>} : memref<1x8x16x4xf32, #tpu.memory_space<vmem>>, vector<1x4x4x4xf32>,
    return
  }
  func.func @transform_0(%arg0: i32, %arg1: i32) -> (i32, i32, i32) {
    %c0_i32 = arith.constant 0 : i32
    %c0_i32_0 = arith.constant 0 : i32
    return %arg0, %c0_i32, %arg1 : i32, i32, i32
  }
  func.func @transform_1(%arg0: i32, %arg1: i32) -> (i32, i32, i32, i32) {
    %c0_i32 = arith.constant 0 : i32
    %c0_i32_0 = arith.constant 0 : i32
    %c0_i32_1 = arith.constant 0 : i32
    return %arg0, %arg1, %c0_i32, %c0_i32_0 : i32, i32, i32, i32
  }
}

</mosaic_0001>

<llo_original>
// kernel: tpu_custom_call.1
$region0: #{tpu_custom_call.1}
  #allocation0 [shape = 'u32[]', space=smem, size = 0x4, offset = 0x4, fixed_abs, tag = 'smem constant byte address 0x4 - core index']
  #allocation1 [shape = 'u32[144,128]{1,0:T(1,128)}', space=vmem, size = 0x12000, scoped, tag = 'internal scratch']
  %s0 = inlined_call_operand.hbm [shape: f32[2,4,256], index: 0, kind: input, shape index: {}]
  %s1 = inlined_call_operand.vmem [shape: f32[2,16,16,4], index: 1, kind: output, shape index: {}]
  %s2 = sld [smem:[#allocation0]]
  $region41: #{tpu_custom_call.1} parent=0
    _
  %s4 = ssub.s32 1, %s2
  %s5 = scalar_select 0, %s4, %s2
  $region1: #{tpu_custom_call.1} parent=0
    #allocation2 [shape = 'u8[4096]{0}', space=vmem, size = 0x1000, scoped, tag = 'input window, operand 0']
    #allocation3 [shape = 's32[2]{0}', space=sflag, size = 0x8, scoped, tag = 'scoped memory for tpu_custom_call.1']
    %6 = vsyncpa [#allocation3], 0
    %s7 = scalar_lea.sflag [#allocation3], 1
    %8 = vsyncpa %s7, 0
    loop: start=0, step=1, limit=6
    $region2: #{tpu_custom_call.1} parent=1 // loop_pre_header
      _
    $region3: #{tpu_custom_call.1} parent=1 // loop_header
      %s10 = sphi 0, %s14
      %p11 = scmp.ge.s32.totalorder %s10, 6
      %s17 = sphi 0, %s29
      %s18 = sphi 0, %s25
      %s19 = sphi 0, %s17
      %s20 = sphi 0, %s18
      %s21 = sphi 0, %s19
      %s22 = sphi 0, %s20
      %s34 = sphi 0, %s36
      %s37 = sphi 0, %s34
      %s38 = sphi 0, %s37
      %s54 = sphi 0, %s38
      %s62 = sphi 0, %s64
      %s65 = sphi 0, %s62
      %s66 = sphi 0, %s65
      %s82 = sphi 0, %s66
    $region4: #{tpu_custom_call.1} parent=1 // loop_header_branch
      %13 = sbr.rel (%p11) target = $region8
    $region5: #{tpu_custom_call.1} parent=1 // loop_body
      %s15 = ssub.s32 %s10, 1
      %s16 = ssub.s32 %s10, 2
      %s23 = sadd.s32 1, %s18
      %p24 = scmp.ge.s32.totalorder %s23, 2
      %s25 = scalar_select %p24, 0, %s23
      %s26 = sadd.s32 1, %s17
      %s27 = scalar_select %p24, %s26, %s17
      %p28 = scmp.ge.s32.totalorder %s27, 2
      %s29 = scalar_select %p28, 0, %s27
      %s30 = ssub.s32 %s17, %s29
      %s31 = ssub.s32 %s18, %s25
      %s32 = sor.u32 %s30, %s31
      %p33 = scmp.eq.s32.totalorder %s32, 0
      %s35 = sadd.s32 %s34, 1
      %s36 = scalar_select %p33, %s34, %s35
      %p39 = pneg %p33
      %p40 = scmp.eq.s32.totalorder %s10, 3
      %p41 = por %p39, %p40
      %p42 = scmp.ne.s32.totalorder %s34, %s37
      %p43 = scmp.eq.s32.totalorder %s10, 0
      %p44 = por %p42, %p43
      %p45 = scmp.ne.s32.totalorder %s34, %s37
      %p46 = scmp.eq.s32.totalorder %s15, 3
      %p47 = por %p45, %p46
      %p48 = scmp.ne.s32.totalorder %s37, %s38
      %p49 = scmp.eq.s32.totalorder %s15, 0
      %p50 = por %p48, %p49
      %p51 = scmp.ne.s32.totalorder %s37, %s38
      %p52 = scmp.eq.s32.totalorder %s16, 3
      %p53 = por %p51, %p52
      %p55 = scmp.ne.s32.totalorder %s38, %s54
      %p56 = scmp.eq.s32.totalorder %s16, 0
      %p57 = por %p55, %p56
      %s58 = ssub.s32 %s17, %s29
      %s59 = ssub.s32 %s18, %s25
      %s60 = sor.u32 %s58, %s59
      %p61 = scmp.eq.s32.totalorder %s60, 0
      %s63 = sadd.s32 %s62, 1
      %s64 = scalar_select %p61, %s62, %s63
      %p67 = pneg %p61
      %p68 = scmp.eq.s32.totalorder %s10, 3
      %p69 = por %p67, %p68
      %p70 = scmp.ne.s32.totalorder %s62, %s65
      %p71 = scmp.eq.s32.totalorder %s10, 0
      %p72 = por %p70, %p71
      %p73 = scmp.ne.s32.totalorder %s62, %s65
      %p74 = scmp.eq.s32.totalorder %s15, 3
      %p75 = por %p73, %p74
      %p76 = scmp.ne.s32.totalorder %s65, %s66
      %p77 = scmp.eq.s32.totalorder %s15, 0
      %p78 = por %p76, %p77
      %p79 = scmp.ne.s32.totalorder %s65, %s66
      %p80 = scmp.eq.s32.totalorder %s16, 3
      %p81 = por %p79, %p80
      %p83 = scmp.ne.s32.totalorder %s66, %s82
      %p84 = scmp.eq.s32.totalorder %s16, 0
      %p85 = por %p83, %p84
      %p86 = scmp.le.s32.totalorder 1, %s10
      %p87 = scmp.lt.s32.totalorder %s10, 5
      %p88 = pnand %p86, %p87
      %p89 = pneg %p88
      // Predicated region
      $region9: #{tpu_custom_call.1} parent=5 // pred_check
        _
      $region10: #{tpu_custom_call.1} parent=5 // pred_check_branch
        %91 = sbr.rel (%p88) target = $region12
      $region11: #{tpu_custom_call.1} parent=5 // pred_region
        %s92 = ssub.s32 %s10, 1
      $region12: #{tpu_custom_call.1} parent=5 // pred_fallthru
        _
      %p93 = scmp.lt.s32.totalorder %s10, 4
      // Predicated region
      $region13: #{tpu_custom_call.1} parent=5 // pred_check
        %p94 = pneg %p93
      $region14: #{tpu_custom_call.1} parent=5 // pred_check_branch
        %96 = sbr.rel (%p94) target = $region16
      $region15: #{tpu_custom_call.1} parent=5 // pred_region
        // Predicated region
        $region17: #{tpu_custom_call.1} parent=15 // pred_check
          %p97 = pneg %p44
        $region18: #{tpu_custom_call.1} parent=15 // pred_check_branch
          %99 = sbr.rel (%p97) target = $region20
        $region19: #{tpu_custom_call.1} parent=15 // pred_region
          %s100 = sand.u32 %s34, 1
          %s101 = scalar_lea.sflag [#allocation3], %s100
          %s102 = sand.u32 %s34, 1
          %s103 = smul.addr %s102, 4
          %s104 = scalar_lea.vmem [#allocation2], %s103
          %s106 = ssub.s32 64, 64
          %107 = vsyncadd %s101, %s106
          %s108 = smul.addr %s17, 2
          %s109 = sadd.s32 %s18, %s108
          %s110 = smul.addr %s109, 64
          %s111 = scalar_lea.hbm %s0, %s110
          %s113 = sshll.u32 %s104, 4
          %s114 = int_to_ptr.vmem [resolvable:$true] %s113
          %116 = dma.hbm_to_vmem [thread:$0]  %s111, 64, %s114, %s101
        $region20: #{tpu_custom_call.1} parent=15 // pred_fallthru
          _
      $region16: #{tpu_custom_call.1} parent=5 // pred_fallthru
        _
      %p117 = scmp.le.s32.totalorder 1, %s10
      %p118 = scmp.lt.s32.totalorder %s10, 5
      %p119 = pnand %p117, %p118
      %p120 = pneg %p119
      // Predicated region
      $region21: #{tpu_custom_call.1} parent=5 // pred_check
        _
      $region22: #{tpu_custom_call.1} parent=5 // pred_check_branch
        %122 = sbr.rel (%p119) target = $region24
      $region23: #{tpu_custom_call.1} parent=5 // pred_region
        %s123 = ssub.s32 %s10, 1
        %s124 = sand.u32 %s37, 1
        %s125 = scalar_lea.sflag [#allocation3], %s124
        %s126 = sand.u32 %s37, 1
        %s127 = smul.addr %s126, 4
        %s128 = scalar_lea.vmem [#allocation2], %s127
        // Predicated region
        $region25: #{tpu_custom_call.1} parent=23 // pred_check
          %p129 = pneg %p50
        $region26: #{tpu_custom_call.1} parent=23 // pred_check_branch
          %131 = sbr.rel (%p129) target = $region28
        $region27: #{tpu_custom_call.1} parent=23 // pred_region
          %132 = dma.done %s125, 64
        $region28: #{tpu_custom_call.1} parent=23 // pred_fallthru
          _
        %s133 = sand.u32 %s37, 1
        %s134 = scalar_lea.sflag [#allocation3], %s133
        %s135 = sand.u32 %s37, 1
        %s136 = smul.addr %s135, 4
        %s137 = scalar_lea.vmem [#allocation2], %s136
        %p138 = pneg %p50
        %p139 = pneg %p47
        %p140 = pneg %p78
        %p141 = pneg %p75
        %s142 = smul.u32 8, %s20
        %p143 = scmp.lt.s32.totalorder %s19, 1
        %s144 = scalar_select %p143, %s19, 1
        %p145 = scmp.lt.s32.totalorder %s142, 15
        %s146 = scalar_select %p145, %s142, 15
        %s147 = smul.addr %s146, 2
        %s148 = smul.addr %s144, 32
        %s149 = sadd.s32 %s147, %s148
        %s150 = smul.addr %s149, 8
        %s151 = scalar_lea.vmem %s1, %s150
        %s152 = smul.u32 8, %s20
        %p153 = scmp.lt.s32.totalorder %s19, 1
        %s154 = scalar_select %p153, %s19, 1
        %p155 = scmp.lt.s32.totalorder %s152, 15
        %s156 = scalar_select %p155, %s152, 15
        %s157 = smul.addr %s156, 2
        %s158 = smul.addr %s154, 32
        %s159 = sadd.s32 %s157, %s158
        %s160 = smul.addr %s159, 8
        %s161 = scalar_lea.vmem %s1, %s160
        %s162 = smul.u32 8, %s20
        %v163 = vld [vmem:[%s128] sm:$0xf]
        %164 = vxpose.xlu0.b32.start [1/16] %v163, 128
        %165 = vxpose.xlu0.b32.cont [2/16] 0.0, 128
        %166 = vxpose.xlu0.b32.cont [3/16] 0.0, 128
        %167 = vxpose.xlu0.b32.cont [4/16] 0.0, 128
        %168 = vxpose.xlu0.b32.cont [5/16] 0.0, 128
        %169 = vxpose.xlu0.b32.cont [6/16] 0.0, 128
        %170 = vxpose.xlu0.b32.cont [7/16] 0.0, 128
        %171 = vxpose.xlu0.b32.cont [8/16] 0.0, 128
        %172 = vxpose.xlu0.b32.cont [9/16] 0.0, 128
        %173 = vxpose.xlu0.b32.cont [10/16] 0.0, 128
        %174 = vxpose.xlu0.b32.cont [11/16] 0.0, 128
        %175 = vxpose.xlu0.b32.cont [12/16] 0.0, 128
        %176 = vxpose.xlu0.b32.cont [13/16] 0.0, 128
        %177 = vxpose.xlu0.b32.cont [14/16] 0.0, 128
        %178 = vxpose.xlu0.b32.cont [15/16] 0.0, 128
        %179 = vxpose.xlu0.b32.end [16/16] 0.0, 128
        %v180 = vpop.trf.xlu0
        %v181 = vpop.trf.xlu0
        %v182 = vpop.trf.xlu0
        %v183 = vpop.trf.xlu0
        %v184 = vpop.trf.xlu0
        %v185 = vpop.trf.xlu0
        %v186 = vpop.trf.xlu0
        %v187 = vpop.trf.xlu0
        %v188 = vpop.trf.xlu0
        %v189 = vpop.trf.xlu0
        %v190 = vpop.trf.xlu0
        %v191 = vpop.trf.xlu0
        %v192 = vpop.trf.xlu0
        %v193 = vpop.trf.xlu0
        %v194 = vpop.trf.xlu0
        %v195 = vpop.trf.xlu0
        %v212 = vcombine.high %v180, %v180
        %v213 = vcombine.high %v181, %v181
        %v214 = vcombine.high %v182, %v182
        %v215 = vcombine.high %v183, %v183
        %v216 = vcombine.high %v184, %v184
        %v217 = vcombine.high %v185, %v185
        %v218 = vcombine.high %v186, %v186
        %v219 = vcombine.high %v187, %v187
        %v220 = vcombine.high %v188, %v188
        %v221 = vcombine.high %v189, %v189
        %v222 = vcombine.high %v190, %v190
        %v223 = vcombine.high %v191, %v191
        %v224 = vcombine.high %v192, %v192
        %v225 = vcombine.high %v193, %v193
        %v226 = vcombine.high %v194, %v194
        %v227 = vcombine.high %v195, %v195
        %vm244 = vcmask 27648
        %245 = vst.msk [vmem:[%s161] sm:$0xf] %vm244, %v180
        %246 = vst.msk [vmem:[%s161 + $0x10] sm:$0xf] %vm244, %v212
        %247 = vst.msk [vmem:[%s161 + $0x20] sm:$0xf] %vm244, %v181
        %248 = vst.msk [vmem:[%s161 + $0x30] sm:$0xf] %vm244, %v213
        %249 = vst.msk [vmem:[%s161 + $0x4] sm:$0xf] %vm244, %v182
        %250 = vst.msk [vmem:[%s161 + $0x14] sm:$0xf] %vm244, %v214
        %251 = vst.msk [vmem:[%s161 + $0x24] sm:$0xf] %vm244, %v183
        %252 = vst.msk [vmem:[%s161 + $0x34] sm:$0xf] %vm244, %v215
        %253 = vst.msk [vmem:[%s161 + $0x8] sm:$0xf] %vm244, %v184
        %254 = vst.msk [vmem:[%s161 + $0x18] sm:$0xf] %vm244, %v216
        %255 = vst.msk [vmem:[%s161 + $0x28] sm:$0xf] %vm244, %v185
        %256 = vst.msk [vmem:[%s161 + $0x38] sm:$0xf] %vm244, %v217
        %257 = vst.msk [vmem:[%s161 + $0xc] sm:$0xf] %vm244, %v186
        %258 = vst.msk [vmem:[%s161 + $0x1c] sm:$0xf] %vm244, %v218
        %259 = vst.msk [vmem:[%s161 + $0x2c] sm:$0xf] %vm244, %v187
        %260 = vst.msk [vmem:[%s161 + $0x3c] sm:$0xf] %vm244, %v219
        %s261 = scalar_lea.vmem %s161, 64
        %262 = vst.msk [vmem:[%s261] sm:$0xf] %vm244, %v188
        %263 = vst.msk [vmem:[%s261 + $0x10] sm:$0xf] %vm244, %v220
        %264 = vst.msk [vmem:[%s261 + $0x20] sm:$0xf] %vm244, %v189
        %265 = vst.msk [vmem:[%s261 + $0x30] sm:$0xf] %vm244, %v221
        %266 = vst.msk [vmem:[%s261 + $0x4] sm:$0xf] %vm244, %v190
        %267 = vst.msk [vmem:[%s261 + $0x14] sm:$0xf] %vm244, %v222
        %268 = vst.msk [vmem:[%s261 + $0x24] sm:$0xf] %vm244, %v191
        %269 = vst.msk [vmem:[%s261 + $0x34] sm:$0xf] %vm244, %v223
        %270 = vst.msk [vmem:[%s261 + $0x8] sm:$0xf] %vm244, %v192
        %271 = vst.msk [vmem:[%s261 + $0x18] sm:$0xf] %vm244, %v224
        %272 = vst.msk [vmem:[%s261 + $0x28] sm:$0xf] %vm244, %v193
        %273 = vst.msk [vmem:[%s261 + $0x38] sm:$0xf] %vm244, %v225
        %274 = vst.msk [vmem:[%s261 + $0xc] sm:$0xf] %vm244, %v194
        %275 = vst.msk [vmem:[%s261 + $0x1c] sm:$0xf] %vm244, %v226
        %276 = vst.msk [vmem:[%s261 + $0x2c] sm:$0xf] %vm244, %v195
        %277 = vst.msk [vmem:[%s261 + $0x3c] sm:$0xf] %vm244, %v227
        %s278 = smul.u32 8, %s20
        %p279 = scmp.lt.s32.totalorder %s19, 1
        %s280 = scalar_select %p279, %s19, 1
        %p281 = scmp.lt.s32.totalorder %s278, 15
        %s282 = scalar_select %p281, %s278, 15
        %s283 = smul.addr %s282, 2
        %s284 = smul.addr %s280, 32
        %s285 = sadd.s32 %s283, %s284
        %s286 = smul.addr %s285, 8
        %s287 = scalar_lea.vmem %s1, %s286
        // Predicated region
        $region29: #{tpu_custom_call.1} parent=23 // pred_check
          %p288 = pneg %p75
        $region30: #{tpu_custom_call.1} parent=23 // pred_check_branch
          %290 = sbr.rel (%p288) target = $region32
        $region31: #{tpu_custom_call.1} parent=23 // pred_region
          %s291 = smul.u32 8, %s20
        $region32: #{tpu_custom_call.1} parent=23 // pred_fallthru
          _
      $region24: #{tpu_custom_call.1} parent=5 // pred_fallthru
        _
      %p292 = scmp.le.s32.totalorder 2, %s10
      // Predicated region
      $region33: #{tpu_custom_call.1} parent=5 // pred_check
        %p293 = pneg %p292
      $region34: #{tpu_custom_call.1} parent=5 // pred_check_branch
        %295 = sbr.rel (%p293) target = $region36
      $region35: #{tpu_custom_call.1} parent=5 // pred_region
        %s296 = ssub.s32 %s10, 2
        // Predicated region
        $region37: #{tpu_custom_call.1} parent=35 // pred_check
          %p297 = pneg %p81
        $region38: #{tpu_custom_call.1} parent=35 // pred_check_branch
          %299 = sbr.rel (%p297) target = $region40
        $region39: #{tpu_custom_call.1} parent=35 // pred_region
          %s300 = smul.u32 8, %s22
          %p301 = scmp.lt.s32.totalorder %s21, 1
          %s302 = scalar_select %p301, %s21, 1
          %p303 = scmp.lt.s32.totalorder %s300, 15
          %s304 = scalar_select %p303, %s300, 15
          %s305 = smul.addr %s304, 2
          %s306 = smul.addr %s302, 32
          %s307 = sadd.s32 %s305, %s306
          %s308 = smul.addr %s307, 8
          %s309 = scalar_lea.vmem %s1, %s308
        $region40: #{tpu_custom_call.1} parent=35 // pred_fallthru
          _
      $region36: #{tpu_custom_call.1} parent=5 // pred_fallthru
        _
    $region6: #{tpu_custom_call.1} parent=1 // loop_footer
      %s14 = sadd.s32 1, %s10
    $region7: #{tpu_custom_call.1} parent=1 // loop_footer_branch
      %9 = sbr.rel target = $region3
    $region8: #{tpu_custom_call.1} parent=1 // loop_exit
      _
    %310 = vsyncpa [#allocation3], 1
    %s311 = scalar_lea.sflag [#allocation3], 1
    %312 = vsyncpa %s311, 1

</llo_original>
